<compile_context>
chip_gen: v5e
topology: v5e:2x2
jax: 0.10.0
libtpu: 0.0.40
codegen_flags: <defaults>
</compile_context>

<pallas_src>
import functools

import jax
import jax.numpy as jnp
from jax import lax
from jax.experimental import pallas as pl
from jax.experimental.pallas import tpu as pltpu

# Architecture from build_net_architecture + final classifier layer.
HIDDEN = [64, 64, 32, 16, 8]

# Upper bound on the batch tile (rows per grid step).  Beyond ~8K rows the
# per-step overhead is already negligible and intermediates just grow.
DEFAULT_TILE_B_MAX = 8192


def _round_up(x, m):
    return ((x + m - 1) // m) * m


def _cdiv(a, b):
    return -(-a // b)


@functools.lru_cache(maxsize=1)
def _tpu_vmem_capacity_bytes():
    """Physical VMEM per TensorCore; conservative fallback = v7x (64 MiB)."""
    try:
        info = pltpu.get_tpu_info()
        cap = int(getattr(info, "vmem_capacity_bytes", 0))
        if cap > 0:
            return cap
    except Exception:
        pass
    return 64 << 20


def _pick_tiling(B, input_dim, num_classes, compute_dtype, param_bytes, tile_b_max):
    """Choose (tb, n_tiles) from a per-generation VMEM budget + near-even split."""
    cap = _tpu_vmem_capacity_bytes()
    # Budget for the pipeline working set: ~65% of physical, capped at 48 MiB
    # (v5e/v6e have 128 MiB physical; v7x only 64 MiB -> ~41 MiB budget there).
    budget = min(int(0.65 * cap), 48 << 20)

    cdt = jnp.dtype(compute_dtype).itemsize
    ncp = _round_up(num_classes, 8)
    # Per-batch-row VMEM:
    #   2 x (tb, input_dim) x-blocks (double-buffered input)
    #   1 x possible transposed x staging for the trans_b matmul in layer 0
    #   2 x (num_classes, tb) f32 out-blocks (double-buffered output)
    #   ~3 live (64, tb) f32 intermediates inside the fused body
    per_row = 3 * input_dim * cdt + 2 * ncp * 4 + 3 * 64 * 4
    avail = budget - 2 * param_bytes - (2 << 20)          # resident params + slack
    tb_cap = max(128, (max(avail, 128 * per_row) // per_row) // 128 * 128)
    tb_cap = min(tb_cap, max(128, tile_b_max // 128 * 128))

    b128 = _round_up(B, 128)
    n_tiles = max(1, _cdiv(b128, tb_cap))
    # Prefer >= 2 tiles so the "parallel" batch axis can use both v7x TCs.
    if n_tiles == 1 and b128 >= 256:
        n_tiles = 2
    tb = _round_up(_cdiv(B, n_tiles), 128)                # near-even, minimal padding
    return tb, n_tiles, cap


def mlp_kernel(*refs):
    """refs = (x_ref, w0, b0, ..., w5, b5, out_ref).

    x_ref:   (tb, input_dim)  compute dtype, batch on sublanes (natural x layout)
    w_i:     (out_i, in_i)    compute dtype (PyTorch nn.Linear orientation)
    b_i:     (out_i, 1)       f32
    out_ref: (num_classes, tb) f32  -- batch on lanes => lane-dense stores.
    """
    x_ref = refs[0]
    out_ref = refs[-1]
    param_refs = refs[1:-1]
    n_layers = len(param_refs) // 2

    x = x_ref[...]                       # (tb, input_dim)
    act_dtype = x.dtype

    # Layer 0: hT = relu(W0 @ x^T + b0), computed directly in (features, batch)
    # orientation.  dot_general contracts both operands' feature axis (trans_b),
    # so no explicit transpose op is emitted for the large x tile.
    w0 = param_refs[0][...]              # (64, input_dim)
    b0 = param_refs[1][...]              # (64, 1) f32 -> broadcasts over lanes
    acc = lax.dot_general(
        w0, x, (((1,), (1,)), ((), ())),
        preferred_element_type=jnp.float32) + b0
    h = jnp.maximum(acc, 0.0).astype(act_dtype)          # (64, tb)

    # Layers 1..5 stay batch-on-lanes: hT_new = W_i @ hT (+ bias, ReLU except last).
    for i in range(1, n_layers):
        w = param_refs[2 * i][...]       # (out_i, in_i)
        b = param_refs[2 * i + 1][...]   # (out_i, 1) f32
        acc = jnp.dot(w, h, preferred_element_type=jnp.float32) + b
        if i < n_layers - 1:
            # Narrow inter-layer activations cap vreg/VMEM pressure; the matmul
            # accumulation itself stays f32 via preferred_element_type.
            h = jnp.maximum(acc, 0.0).astype(act_dtype)
        else:
            h = acc                      # (num_classes, tb) f32 logits

    out_ref[...] = h.astype(out_ref.dtype)   # full-lane (unmasked) store


def init_params(key, input_dim, num_classes):
    """Matches the PyTorch module's _initialize_weights:
    weight ~ Normal(0, 1), bias = 0.  Stored in nn.Linear orientation (out, in)."""
    dims = [input_dim] + HIDDEN + [num_classes]
    params = []
    for i in range(len(dims) - 1):
        key, sub = jax.random.split(key)
        w = jax.random.normal(sub, (dims[i + 1], dims[i]), dtype=jnp.float32)
        b = jnp.zeros((dims[i + 1],), dtype=jnp.float32)
        params.append((w, b))
    return params


@functools.partial(jax.jit, static_argnames=("tile_b_max", "compute_dtype"))
def classification_net_forward(x, params, *, tile_b_max=DEFAULT_TILE_B_MAX,
                               compute_dtype=jnp.bfloat16):
    B, input_dim = x.shape
    num_classes = params[-1][0].shape[0]

    flat_params = []
    param_bytes = 0
    for w, b in params:
        wc = w.astype(compute_dtype)
        bc = b.reshape(-1, 1).astype(jnp.float32)        # (out, 1) column bias
        flat_params.append(wc)
        flat_params.append(bc)
        param_bytes += wc.size * wc.dtype.itemsize + bc.size * 4

    tb, n_tiles, vmem_cap = _pick_tiling(
        B, input_dim, num_classes, compute_dtype, param_bytes, tile_b_max)
    Bp = tb * n_tiles

    x = x.astype(compute_dtype)                          # halve HBM bytes on x
    if Bp != B:
        x = jnp.pad(x, ((0, Bp - B), (0, 0)))            # zero rows, sliced off below

    grid = (n_tiles,)

    # x: batch-tiled (double-buffered by the Pallas pipeline).
    # weights/biases: full-array blocks, constant index_map -> fetched once,
    # resident in VMEM across all grid steps.
    in_specs = [pl.BlockSpec((tb, input_dim), lambda i: (i, 0))]
    for p in flat_params:
        in_specs.append(pl.BlockSpec(p.shape, lambda i: (0, 0)))
    # Output is (num_classes, Bp): batch on lanes -> lane-dense stores/DMA.
    out_specs = pl.BlockSpec((num_classes, tb), lambda i: (0, i))

    dims = [input_dim] + HIDDEN + [num_classes]
    flops = 2 * Bp * sum(dims[i] * dims[i + 1] for i in range(len(dims) - 1))
    bytes_accessed = (
        Bp * input_dim * jnp.dtype(compute_dtype).itemsize   # x
        + Bp * num_classes * 4                                # logits (f32)
        + param_bytes
    )

    # Raise the scoped VMEM limit (v5e default 16 MiB / v6e 32 MiB) while
    # staying well inside physical VMEM on v7x (64 MiB).
    vmem_limit = max(32 << 20, min(int(0.9 * vmem_cap), 112 << 20))

    out_t = pl.pallas_call(
        mlp_kernel,
        out_shape=jax.ShapeDtypeStruct((num_classes, Bp), jnp.float32),
        grid=grid,
        in_specs=in_specs,
        out_specs=out_specs,
        compiler_params=pltpu.CompilerParams(
            # Batch axis is embarrassingly parallel: lets v7x shard the tiles
            # across its two TensorCores (harmless on single-TC v5e/v6e).
            dimension_semantics=("parallel",),
            vmem_limit_bytes=int(vmem_limit),
        ),
        cost_estimate=pl.CostEstimate(
            flops=int(flops), transcendentals=0, bytes_accessed=int(bytes_accessed)
        ),
    )(x, *flat_params)

    # (num_classes, Bp) -> (B, num_classes); tiny, cheap wrapper-side transpose.
    return jnp.transpose(out_t)[:B]


def reference_forward(x, params):
    """Pure-JAX f32 reference (PyTorch eval-mode forward)."""
    h = x
    for i, (w, b) in enumerate(params):
        h = h @ w.T + b
        if i < len(params) - 1:
            h = jnp.maximum(h, 0.0)
    return h


def reference_forward_bf16(x, params):
    """Reference with the same bf16 quantization as the fast kernel path."""
    h = x.astype(jnp.bfloat16)
    for i, (w, b) in enumerate(params):
        h = jnp.dot(h, w.T.astype(jnp.bfloat16),
                    preferred_element_type=jnp.float32) + b
        if i < len(params) - 1:
            h = jnp.maximum(h, 0.0).astype(jnp.bfloat16)
    return h


if __name__ == "__main__":
    key = jax.random.PRNGKey(0)
    B, input_dim, num_classes = 4, 32, 8

    k_x, k_p = jax.random.split(key)
    x = jax.random.normal(k_x, (B, input_dim), dtype=jnp.float32)
    params = init_params(k_p, input_dim, num_classes)

    y_ref = reference_forward(x, params)
    scale = float(jnp.max(jnp.abs(y_ref))) + 1.0

    # f32 compute path: must closely match the pure-JAX reference.
    y_f32 = jax.block_until_ready(
        classification_net_forward(x, params, compute_dtype=jnp.float32))
    assert y_f32.shape == (B, num_classes)
    err_f32 = float(jnp.max(jnp.abs(y_f32 - y_ref)))
    assert err_f32 <= 2e-3 * scale, f"f32 mismatch: err={err_f32}, scale={scale}"

    # Default bf16 fast path: compare against a bf16-quantized reference.
    y_bf16 = jax.block_until_ready(classification_net_forward(x, params))
    assert y_bf16.shape == (B, num_classes)
    y_ref_bf16 = reference_forward_bf16(x, params)
    err_bf16 = float(jnp.max(jnp.abs(y_bf16 - y_ref_bf16)))
    assert err_bf16 <= 1e-2 * scale, f"bf16 mismatch: err={err_bf16}, scale={scale}"

    print("KERNEL_OK")
</pallas_src>

<mosaic_0001>
module attributes {stable_mosaic.version = 11 : i64} {
  func.func @mlp_kernel(%arg0: i32, %arg1: memref<128x32xf32, #tpu.memory_space<vmem>>, %arg2: memref<64x32xf32, #tpu.memory_space<vmem>>, %arg3: memref<64x1xf32, #tpu.memory_space<vmem>>, %arg4: memref<64x64xf32, #tpu.memory_space<vmem>>, %arg5: memref<64x1xf32, #tpu.memory_space<vmem>>, %arg6: memref<32x64xf32, #tpu.memory_space<vmem>>, %arg7: memref<32x1xf32, #tpu.memory_space<vmem>>, %arg8: memref<16x32xf32, #tpu.memory_space<vmem>>, %arg9: memref<16x1xf32, #tpu.memory_space<vmem>>, %arg10: memref<8x16xf32, #tpu.memory_space<vmem>>, %arg11: memref<8x1xf32, #tpu.memory_space<vmem>>, %arg12: memref<8x8xf32, #tpu.memory_space<vmem>>, %arg13: memref<8x1xf32, #tpu.memory_space<vmem>>, %arg14: memref<8x128xf32, #tpu.memory_space<vmem>>) attributes {dimension_semantics = [#tpu.dimension_semantics<parallel>], iteration_bounds = array<i64: 1>, scalar_prefetch = 0 : i64, scratch_operands = 0 : i64, tpu.core_type = #tpu.core_type<tc>, window_params = [{transform_indices = @transform_0, window_bounds = array<i64: 128, 32>}, {pipeline_mode = #tpu.pipeline_mode<synchronous>, transform_indices = @transform_1, window_bounds = array<i64: 64, 32>}, {pipeline_mode = #tpu.pipeline_mode<synchronous>, transform_indices = @transform_2, window_bounds = array<i64: 64, 1>}, {pipeline_mode = #tpu.pipeline_mode<synchronous>, transform_indices = @transform_3, window_bounds = array<i64: 64, 64>}, {pipeline_mode = #tpu.pipeline_mode<synchronous>, transform_indices = @transform_4, window_bounds = array<i64: 64, 1>}, {pipeline_mode = #tpu.pipeline_mode<synchronous>, transform_indices = @transform_5, window_bounds = array<i64: 32, 64>}, {pipeline_mode = #tpu.pipeline_mode<synchronous>, transform_indices = @transform_6, window_bounds = array<i64: 32, 1>}, {pipeline_mode = #tpu.pipeline_mode<synchronous>, transform_indices = @transform_7, window_bounds = array<i64: 16, 32>}, {pipeline_mode = #tpu.pipeline_mode<synchronous>, transform_indices = @transform_8, window_bounds = array<i64: 16, 1>}, {pipeline_mode = #tpu.pipeline_mode<synchronous>, transform_indices = @transform_9, window_bounds = array<i64: 8, 16>}, {pipeline_mode = #tpu.pipeline_mode<synchronous>, transform_indices = @transform_10, window_bounds = array<i64: 8, 1>}, {pipeline_mode = #tpu.pipeline_mode<synchronous>, transform_indices = @transform_11, window_bounds = array<i64: 8, 8>}, {pipeline_mode = #tpu.pipeline_mode<synchronous>, transform_indices = @transform_12, window_bounds = array<i64: 8, 1>}, {transform_indices = @transform_13, window_bounds = array<i64: 8, 128>}]} {
    %c0 = arith.constant 0 : index
    %c0_0 = arith.constant 0 : index
    %0 = vector.load %arg1[%c0, %c0_0] : memref<128x32xf32, #tpu.memory_space<vmem>>, vector<128x32xf32>
    %c0_1 = arith.constant 0 : index
    %c0_2 = arith.constant 0 : index
    %1 = vector.load %arg2[%c0_1, %c0_2] : memref<64x32xf32, #tpu.memory_space<vmem>>, vector<64x32xf32>
    %c0_3 = arith.constant 0 : index
    %c0_4 = arith.constant 0 : index
    %2 = vector.load %arg3[%c0_3, %c0_4] : memref<64x1xf32, #tpu.memory_space<vmem>>, vector<64x1xf32>
    %cst = arith.constant dense<0.000000e+00> : vector<64x128xf32>
    %3 = tpu.matmul %1, %0, %cst {dimension_numbers = #tpu.dot_dimension_numbers<[1], [1], [0], [0], [0, 0, 1, 0], [], []>} : vector<64x32xf32>, vector<128x32xf32>, vector<64x128xf32> -> vector<64x128xf32>
    %4 = vector.broadcast %2 : vector<64x1xf32> to vector<64x128xf32>
    %5 = arith.addf %3, %4 : vector<64x128xf32>
    %cst_5 = arith.constant 0.000000e+00 : f32
    %6 = vector.broadcast %cst_5 : f32 to vector<64x128xf32>
    %7 = arith.maximumf %5, %6 : vector<64x128xf32>
    %c0_6 = arith.constant 0 : index
    %c0_7 = arith.constant 0 : index
    %8 = vector.load %arg4[%c0_6, %c0_7] : memref<64x64xf32, #tpu.memory_space<vmem>>, vector<64x64xf32>
    %c0_8 = arith.constant 0 : index
    %c0_9 = arith.constant 0 : index
    %9 = vector.load %arg5[%c0_8, %c0_9] : memref<64x1xf32, #tpu.memory_space<vmem>>, vector<64x1xf32>
    %cst_10 = arith.constant dense<0.000000e+00> : vector<64x128xf32>
    %10 = tpu.matmul %8, %7, %cst_10 {dimension_numbers = #tpu.dot_dimension_numbers<[1], [0], [0], [1], [0, 0, 1, 1], [], []>} : vector<64x64xf32>, vector<64x128xf32>, vector<64x128xf32> -> vector<64x128xf32>
    %11 = vector.broadcast %9 : vector<64x1xf32> to vector<64x128xf32>
    %12 = arith.addf %10, %11 : vector<64x128xf32>
    %cst_11 = arith.constant 0.000000e+00 : f32
    %13 = vector.broadcast %cst_11 : f32 to vector<64x128xf32>
    %14 = arith.maximumf %12, %13 : vector<64x128xf32>
    %c0_12 = arith.constant 0 : index
    %c0_13 = arith.constant 0 : index
    %15 = vector.load %arg6[%c0_12, %c0_13] : memref<32x64xf32, #tpu.memory_space<vmem>>, vector<32x64xf32>
    %c0_14 = arith.constant 0 : index
    %c0_15 = arith.constant 0 : index
    %16 = vector.load %arg7[%c0_14, %c0_15] : memref<32x1xf32, #tpu.memory_space<vmem>>, vector<32x1xf32>
    %cst_16 = arith.constant dense<0.000000e+00> : vector<32x128xf32>
    %17 = tpu.matmul %15, %14, %cst_16 {dimension_numbers = #tpu.dot_dimension_numbers<[1], [0], [0], [1], [0, 0, 1, 1], [], []>} : vector<32x64xf32>, vector<64x128xf32>, vector<32x128xf32> -> vector<32x128xf32>
    %18 = vector.broadcast %16 : vector<32x1xf32> to vector<32x128xf32>
    %19 = arith.addf %17, %18 : vector<32x128xf32>
    %cst_17 = arith.constant 0.000000e+00 : f32
    %20 = vector.broadcast %cst_17 : f32 to vector<32x128xf32>
    %21 = arith.maximumf %19, %20 : vector<32x128xf32>
    %c0_18 = arith.constant 0 : index
    %c0_19 = arith.constant 0 : index
    %22 = vector.load %arg8[%c0_18, %c0_19] : memref<16x32xf32, #tpu.memory_space<vmem>>, vector<16x32xf32>
    %c0_20 = arith.constant 0 : index
    %c0_21 = arith.constant 0 : index
    %23 = vector.load %arg9[%c0_20, %c0_21] : memref<16x1xf32, #tpu.memory_space<vmem>>, vector<16x1xf32>
    %cst_22 = arith.constant dense<0.000000e+00> : vector<16x128xf32>
    %24 = tpu.matmul %22, %21, %cst_22 {dimension_numbers = #tpu.dot_dimension_numbers<[1], [0], [0], [1], [0, 0, 1, 1], [], []>} : vector<16x32xf32>, vector<32x128xf32>, vector<16x128xf32> -> vector<16x128xf32>
    %25 = vector.broadcast %23 : vector<16x1xf32> to vector<16x128xf32>
    %26 = arith.addf %24, %25 : vector<16x128xf32>
    %cst_23 = arith.constant 0.000000e+00 : f32
    %27 = vector.broadcast %cst_23 : f32 to vector<16x128xf32>
    %28 = arith.maximumf %26, %27 : vector<16x128xf32>
    %c0_24 = arith.constant 0 : index
    %c0_25 = arith.constant 0 : index
    %29 = vector.load %arg10[%c0_24, %c0_25] : memref<8x16xf32, #tpu.memory_space<vmem>>, vector<8x16xf32>
    %c0_26 = arith.constant 0 : index
    %c0_27 = arith.constant 0 : index
    %30 = vector.load %arg11[%c0_26, %c0_27] : memref<8x1xf32, #tpu.memory_space<vmem>>, vector<8x1xf32>
    %cst_28 = arith.constant dense<0.000000e+00> : vector<8x128xf32>
    %31 = tpu.matmul %29, %28, %cst_28 {dimension_numbers = #tpu.dot_dimension_numbers<[1], [0], [0], [1], [0, 0, 1, 1], [], []>} : vector<8x16xf32>, vector<16x128xf32>, vector<8x128xf32> -> vector<8x128xf32>
    %32 = vector.broadcast %30 : vector<8x1xf32> to vector<8x128xf32>
    %33 = arith.addf %31, %32 : vector<8x128xf32>
    %cst_29 = arith.constant 0.000000e+00 : f32
    %34 = vector.broadcast %cst_29 : f32 to vector<8x128xf32>
    %35 = arith.maximumf %33, %34 : vector<8x128xf32>
    %c0_30 = arith.constant 0 : index
    %c0_31 = arith.constant 0 : index
    %36 = vector.load %arg12[%c0_30, %c0_31] : memref<8x8xf32, #tpu.memory_space<vmem>>, vector<8x8xf32>
    %c0_32 = arith.constant 0 : index
    %c0_33 = arith.constant 0 : index
    %37 = vector.load %arg13[%c0_32, %c0_33] : memref<8x1xf32, #tpu.memory_space<vmem>>, vector<8x1xf32>
    %cst_34 = arith.constant dense<0.000000e+00> : vector<8x128xf32>
    %38 = tpu.matmul %36, %35, %cst_34 {dimension_numbers = #tpu.dot_dimension_numbers<[1], [0], [0], [1], [0, 0, 1, 1], [], []>} : vector<8x8xf32>, vector<8x128xf32>, vector<8x128xf32> -> vector<8x128xf32>
    %39 = vector.broadcast %37 : vector<8x1xf32> to vector<8x128xf32>
    %40 = arith.addf %38, %39 : vector<8x128xf32>
    %c0_35 = arith.constant 0 : index
    %c0_36 = arith.constant 0 : index
    %41 = vector.load %arg14[%c0_35, %c0_36] : memref<8x128xf32, #tpu.memory_space<vmem>>, vector<8x128xf32>
    tpu.vector_store %arg14[%c0_35, %c0_36], %40 {strides = array<i32>} : memref<8x128xf32, #tpu.memory_space<vmem>>, vector<8x128xf32>,
    return
  }
  func.func @transform_0(%arg0: i32) -> (i32, i32) {
    %c0_i32 = arith.constant 0 : i32
    %c0_i32_0 = arith.constant 0 : i32
    return %arg0, %c0_i32 : i32, i32
  }
  func.func @transform_1(%arg0: i32) -> (i32, i32) {
    %c0_i32 = arith.constant 0 : i32
    %c0_i32_0 = arith.constant 0 : i32
    %c0_i32_1 = arith.constant 0 : i32
    return %c0_i32, %c0_i32_0 : i32, i32
  }
  func.func @transform_2(%arg0: i32) -> (i32, i32) {
    %c0_i32 = arith.constant 0 : i32
    %c0_i32_0 = arith.constant 0 : i32
    %c0_i32_1 = arith.constant 0 : i32
    return %c0_i32, %c0_i32_0 : i32, i32
  }
  func.func @transform_3(%arg0: i32) -> (i32, i32) {
    %c0_i32 = arith.constant 0 : i32
    %c0_i32_0 = arith.constant 0 : i32
    %c0_i32_1 = arith.constant 0 : i32
    return %c0_i32, %c0_i32_0 : i32, i32
  }
  func.func @transform_4(%arg0: i32) -> (i32, i32) {
    %c0_i32 = arith.constant 0 : i32
    %c0_i32_0 = arith.constant 0 : i32
    %c0_i32_1 = arith.constant 0 : i32
    return %c0_i32, %c0_i32_0 : i32, i32
  }
  func.func @transform_5(%arg0: i32) -> (i32, i32) {
    %c0_i32 = arith.constant 0 : i32
    %c0_i32_0 = arith.constant 0 : i32
    %c0_i32_1 = arith.constant 0 : i32
    return %c0_i32, %c0_i32_0 : i32, i32
  }
  func.func @transform_6(%arg0: i32) -> (i32, i32) {
    %c0_i32 = arith.constant 0 : i32
    %c0_i32_0 = arith.constant 0 : i32
    %c0_i32_1 = arith.constant 0 : i32
    return %c0_i32, %c0_i32_0 : i32, i32
  }
  func.func @transform_7(%arg0: i32) -> (i32, i32) {
    %c0_i32 = arith.constant 0 : i32
    %c0_i32_0 = arith.constant 0 : i32
    %c0_i32_1 = arith.constant 0 : i32
    return %c0_i32, %c0_i32_0 : i32, i32
  }
  func.func @transform_8(%arg0: i32) -> (i32, i32) {
    %c0_i32 = arith.constant 0 : i32
    %c0_i32_0 = arith.constant 0 : i32
    %c0_i32_1 = arith.constant 0 : i32
    return %c0_i32, %c0_i32_0 : i32, i32
  }
  func.func @transform_9(%arg0: i32) -> (i32, i32) {
    %c0_i32 = arith.constant 0 : i32
    %c0_i32_0 = arith.constant 0 : i32
    %c0_i32_1 = arith.constant 0 : i32
    return %c0_i32, %c0_i32_0 : i32, i32
  }
  func.func @transform_10(%arg0: i32) -> (i32, i32) {
    %c0_i32 = arith.constant 0 : i32
    %c0_i32_0 = arith.constant 0 : i32
    %c0_i32_1 = arith.constant 0 : i32
    return %c0_i32, %c0_i32_0 : i32, i32
  }
  func.func @transform_11(%arg0: i32) -> (i32, i32) {
    %c0_i32 = arith.constant 0 : i32
    %c0_i32_0 = arith.constant 0 : i32
    %c0_i32_1 = arith.constant 0 : i32
    return %c0_i32, %c0_i32_0 : i32, i32
  }
  func.func @transform_12(%arg0: i32) -> (i32, i32) {
    %c0_i32 = arith.constant 0 : i32
    %c0_i32_0 = arith.constant 0 : i32
    %c0_i32_1 = arith.constant 0 : i32
    return %c0_i32, %c0_i32_0 : i32, i32
  }
  func.func @transform_13(%arg0: i32) -> (i32, i32) {
    %c0_i32 = arith.constant 0 : i32
    %c0_i32_0 = arith.constant 0 : i32
    return %c0_i32, %arg0 : i32, i32
  }
}

</mosaic_0001>

<llo_original>
// kernel: classification_net_forward.1
$region0: #{classification_net_forward.1}
  #allocation0 [shape = 'u32[]', space=smem, size = 0x4, offset = 0x4, fixed_abs, tag = 'smem constant byte address 0x4 - core index']
  #allocation1 [shape = 'u32[72,128]{1,0:T(1,128)}', space=vmem, size = 0x9000, scoped, tag = 'internal scratch']
  %s0 = inlined_call_operand.vmem [shape: f32[128,32], index: 0, kind: input, shape index: {}]
  %s1 = inlined_call_operand.vmem [shape: f32[64,32], index: 1, kind: input, shape index: {}]
  %s2 = inlined_call_operand.vmem [shape: f32[64,1], index: 2, kind: input, shape index: {}]
  %s3 = inlined_call_operand.vmem [shape: f32[64,64], index: 3, kind: input, shape index: {}]
  %s4 = inlined_call_operand.vmem [shape: f32[64,1], index: 4, kind: input, shape index: {}]
  %s5 = inlined_call_operand.vmem [shape: f32[32,64], index: 5, kind: input, shape index: {}]
  %s6 = inlined_call_operand.vmem [shape: f32[32,1], index: 6, kind: input, shape index: {}]
  %s7 = inlined_call_operand.vmem [shape: f32[16,32], index: 7, kind: input, shape index: {}]
  %s8 = inlined_call_operand.vmem [shape: f32[16,1], index: 8, kind: input, shape index: {}]
  %s9 = inlined_call_operand.vmem [shape: f32[8,16], index: 9, kind: input, shape index: {}]
  %s10 = inlined_call_operand.vmem [shape: f32[8,1], index: 10, kind: input, shape index: {}]
  %s11 = inlined_call_operand.vmem [shape: f32[8,8], index: 11, kind: input, shape index: {}]
  %s12 = inlined_call_operand.vmem [shape: f32[8,1], index: 12, kind: input, shape index: {}]
  %s13 = inlined_call_operand.vmem [shape: f32[8,128], index: 13, kind: output, shape index: {}]
  %s14 = sld [smem:[#allocation0]]
  $region62: #{classification_net_forward.1} parent=0
    _
  %s16 = ssub.s32 1, %s14
  %s17 = scalar_select 0, %s16, %s14
  // Predicated region
  $region2: #{classification_net_forward.1} parent=0 // pred_check
    _
  $region3: #{classification_net_forward.1} parent=0 // pred_check_branch
    %19 = sbr.rel (0) target = $region5
  $region4: #{classification_net_forward.1} parent=0 // pred_region
    _
  $region5: #{classification_net_forward.1} parent=0 // pred_fallthru
    _
  // Predicated region
  $region6: #{classification_net_forward.1} parent=0 // pred_check
    _
  $region7: #{classification_net_forward.1} parent=0 // pred_check_branch
    %21 = sbr.rel (0) target = $region9
  $region8: #{classification_net_forward.1} parent=0 // pred_region
    _
  $region9: #{classification_net_forward.1} parent=0 // pred_fallthru
    _
  // Predicated region
  $region10: #{classification_net_forward.1} parent=0 // pred_check
    _
  $region11: #{classification_net_forward.1} parent=0 // pred_check_branch
    %23 = sbr.rel (0) target = $region13
  $region12: #{classification_net_forward.1} parent=0 // pred_region
    _
  $region13: #{classification_net_forward.1} parent=0 // pred_fallthru
    _
  // Predicated region
  $region14: #{classification_net_forward.1} parent=0 // pred_check
    _
  $region15: #{classification_net_forward.1} parent=0 // pred_check_branch
    %25 = sbr.rel (0) target = $region17
  $region16: #{classification_net_forward.1} parent=0 // pred_region
    _
  $region17: #{classification_net_forward.1} parent=0 // pred_fallthru
    _
  // Predicated region
  $region18: #{classification_net_forward.1} parent=0 // pred_check
    _
  $region19: #{classification_net_forward.1} parent=0 // pred_check_branch
    %27 = sbr.rel (0) target = $region21
  $region20: #{classification_net_forward.1} parent=0 // pred_region
    _
  $region21: #{classification_net_forward.1} parent=0 // pred_fallthru
    _
  // Predicated region
  $region22: #{classification_net_forward.1} parent=0 // pred_check
    _
  $region23: #{classification_net_forward.1} parent=0 // pred_check_branch
    %29 = sbr.rel (0) target = $region25
  $region24: #{classification_net_forward.1} parent=0 // pred_region
    _
  $region25: #{classification_net_forward.1} parent=0 // pred_fallthru
    _
  // Predicated region
  $region26: #{classification_net_forward.1} parent=0 // pred_check
    _
  $region27: #{classification_net_forward.1} parent=0 // pred_check_branch
    %31 = sbr.rel (0) target = $region29
  $region28: #{classification_net_forward.1} parent=0 // pred_region
    _
  $region29: #{classification_net_forward.1} parent=0 // pred_fallthru
    _
  // Predicated region
  $region30: #{classification_net_forward.1} parent=0 // pred_check
    _
  $region31: #{classification_net_forward.1} parent=0 // pred_check_branch
    %33 = sbr.rel (0) target = $region33
  $region32: #{classification_net_forward.1} parent=0 // pred_region
    _
  $region33: #{classification_net_forward.1} parent=0 // pred_fallthru
    _
  // Predicated region
  $region34: #{classification_net_forward.1} parent=0 // pred_check
    _
  $region35: #{classification_net_forward.1} parent=0 // pred_check_branch
    %35 = sbr.rel (0) target = $region37
  $region36: #{classification_net_forward.1} parent=0 // pred_region
    _
  $region37: #{classification_net_forward.1} parent=0 // pred_fallthru
    _
  // Predicated region
  $region38: #{classification_net_forward.1} parent=0 // pred_check
    _
  $region39: #{classification_net_forward.1} parent=0 // pred_check_branch
    %37 = sbr.rel (0) target = $region41
  $region40: #{classification_net_forward.1} parent=0 // pred_region
    _
  $region41: #{classification_net_forward.1} parent=0 // pred_fallthru
    _
  // Predicated region
  $region42: #{classification_net_forward.1} parent=0 // pred_check
    _
  $region43: #{classification_net_forward.1} parent=0 // pred_check_branch
    %39 = sbr.rel (0) target = $region45
  $region44: #{classification_net_forward.1} parent=0 // pred_region
    _
  $region45: #{classification_net_forward.1} parent=0 // pred_fallthru
    _
  // Predicated region
  $region46: #{classification_net_forward.1} parent=0 // pred_check
    _
  $region47: #{classification_net_forward.1} parent=0 // pred_check_branch
    %41 = sbr.rel (0) target = $region49
  $region48: #{classification_net_forward.1} parent=0 // pred_region
    _
  $region49: #{classification_net_forward.1} parent=0 // pred_fallthru
    _
  // Predicated region
  $region50: #{classification_net_forward.1} parent=0 // pred_check
    _
  $region51: #{classification_net_forward.1} parent=0 // pred_check_branch
    %43 = sbr.rel (0) target = $region53
  $region52: #{classification_net_forward.1} parent=0 // pred_region
    _
  $region53: #{classification_net_forward.1} parent=0 // pred_fallthru
    _
  %v44 = vld [vmem:[%s0] sm:$0xff]
  %v45 = vld [vmem:[%s0 + $0x8] sm:$0xff]
  %v46 = vld [vmem:[%s0 + $0x10] sm:$0xff]
  %v47 = vld [vmem:[%s0 + $0x18] sm:$0xff]
  %v48 = vld [vmem:[%s0 + $0x20] sm:$0xff]
  %v49 = vld [vmem:[%s0 + $0x28] sm:$0xff]
  %v50 = vld [vmem:[%s0 + $0x30] sm:$0xff]
  %v51 = vld [vmem:[%s0 + $0x38] sm:$0xff]
  %v52 = vld [vmem:[%s0 + $0x40] sm:$0xff]
  %v53 = vld [vmem:[%s0 + $0x48] sm:$0xff]
  %v54 = vld [vmem:[%s0 + $0x50] sm:$0xff]
  %v55 = vld [vmem:[%s0 + $0x58] sm:$0xff]
  %v56 = vld [vmem:[%s0 + $0x60] sm:$0xff]
  %v57 = vld [vmem:[%s0 + $0x68] sm:$0xff]
  %v58 = vld [vmem:[%s0 + $0x70] sm:$0xff]
  %v59 = vld [vmem:[%s0 + $0x78] sm:$0xff]
  %v60 = vld [vmem:[%s1] sm:$0xff]
  %v61 = vld [vmem:[%s1 + $0x8] sm:$0xff]
  %v62 = vld [vmem:[%s1 + $0x10] sm:$0xff]
  %v63 = vld [vmem:[%s1 + $0x18] sm:$0xff]
  %v64 = vld [vmem:[%s1 + $0x20] sm:$0xff]
  %v65 = vld [vmem:[%s1 + $0x28] sm:$0xff]
  %v66 = vld [vmem:[%s1 + $0x30] sm:$0xff]
  %v67 = vld [vmem:[%s1 + $0x38] sm:$0xff]
  %v68 = vld [vmem:[%s2] sm:$0xff]
  %v69 = vld [vmem:[%s2 + $0x8] sm:$0xff]
  %v70 = vld [vmem:[%s2 + $0x10] sm:$0xff]
  %v71 = vld [vmem:[%s2 + $0x18] sm:$0xff]
  %v72 = vld [vmem:[%s2 + $0x20] sm:$0xff]
  %v73 = vld [vmem:[%s2 + $0x28] sm:$0xff]
  %v74 = vld [vmem:[%s2 + $0x30] sm:$0xff]
  %v75 = vld [vmem:[%s2 + $0x38] sm:$0xff]
  %77 = vset.pattern.permute.xlu0 0
  %78 = vperm.xlu0 %77, %v68
  %v79 = vpop.permute.xlu0 %78
  %82 = vset.pattern.permute.xlu0 0
  %83 = vperm.xlu0 %82, %v69
  %v84 = vpop.permute.xlu0 %83
  %87 = vset.pattern.permute.xlu0 0
  %88 = vperm.xlu0 %87, %v70
  %v89 = vpop.permute.xlu0 %88
  %92 = vset.pattern.permute.xlu0 0
  %93 = vperm.xlu0 %92, %v71
  %v94 = vpop.permute.xlu0 %93
  %97 = vset.pattern.permute.xlu0 0
  %98 = vperm.xlu0 %97, %v72
  %v99 = vpop.permute.xlu0 %98
  %102 = vset.pattern.permute.xlu0 0
  %103 = vperm.xlu0 %102, %v73
  %v104 = vpop.permute.xlu0 %103
  %107 = vset.pattern.permute.xlu0 0
  %108 = vperm.xlu0 %107, %v74
  %v109 = vpop.permute.xlu0 %108
  %112 = vset.pattern.permute.xlu0 0
  %113 = vperm.xlu0 %112, %v75
  %v114 = vpop.permute.xlu0 %113
  %vm116 = vcmask 261120
  %v118 = vsel %vm116, %v60, 0
  %v121 = vsel %vm116, %v61, 0
  %v124 = vsel %vm116, %v62, 0
  %v127 = vsel %vm116, %v63, 0
  %v130 = vsel %vm116, %v64, 0
  %v133 = vsel %vm116, %v65, 0
  %v136 = vsel %vm116, %v66, 0
  %v139 = vsel %vm116, %v67, 0
  %v142 = vsel %vm116, %v44, 0
  %v145 = vsel %vm116, %v45, 0
  %v148 = vsel %vm116, %v46, 0
  %v151 = vsel %vm116, %v47, 0
  %v154 = vsel %vm116, %v48, 0
  %v157 = vsel %vm116, %v49, 0
  %v160 = vsel %vm116, %v50, 0
  %v163 = vsel %vm116, %v51, 0
  %v166 = vsel %vm116, %v52, 0
  %v169 = vsel %vm116, %v53, 0
  %v172 = vsel %vm116, %v54, 0
  %v175 = vsel %vm116, %v55, 0
  %v178 = vsel %vm116, %v56, 0
  %v181 = vsel %vm116, %v57, 0
  %v184 = vsel %vm116, %v58, 0
  %v187 = vsel %vm116, %v59, 0
  %189 = vmatpush.xpose.msra.mxu0 %v187
  %190 = vmatpush.xpose.msra.mxu0 %v184
  %191 = vmatpush.xpose.msra.mxu0 %v181
  %192 = vmatpush.xpose.msra.mxu0 %v178
  %193 = vmatpush.xpose.msra.mxu0 %v175
  %194 = vmatpush.xpose.msra.mxu0 %v172
  %195 = vmatpush.xpose.msra.mxu0 %v169
  %196 = vmatpush.xpose.msra.mxu0 %v166
  %197 = vmatpush.xpose.msra.mxu0 %v163
  %198 = vmatpush.xpose.msra.mxu0 %v160
  %199 = vmatpush.xpose.msra.mxu0 %v157
  %200 = vmatpush.xpose.msra.mxu0 %v154
  %201 = vmatpush.xpose.msra.mxu0 %v151
  %202 = vmatpush.xpose.msra.mxu0 %v148
  %203 = vmatpush.xpose.msra.mxu0 %v145
  %204 = vmatpush.xpose.msra.mxu0 %v142
  %205 = vmatmul.f32.gmra.mxu0 %v118
  %v206 = vpop.f32.mrf.mxu0
  %v207 = vadd.f32 %v79, %v206
  %208 = vmatmul.f32.gmra.mxu0 %v121
  %v209 = vpop.f32.mrf.mxu0
  %v210 = vadd.f32 %v84, %v209
  %211 = vmatmul.f32.gmra.mxu0 %v124
  %v212 = vpop.f32.mrf.mxu0
  %v213 = vadd.f32 %v89, %v212
  %214 = vmatmul.f32.gmra.mxu0 %v127
  %v215 = vpop.f32.mrf.mxu0
  %v216 = vadd.f32 %v94, %v215
  %217 = vmatmul.f32.gmra.mxu0 %v130
  %v218 = vpop.f32.mrf.mxu0
  %v219 = vadd.f32 %v99, %v218
  %220 = vmatmul.f32.gmra.mxu0 %v133
  %v221 = vpop.f32.mrf.mxu0
  %v222 = vadd.f32 %v104, %v221
  %223 = vmatmul.f32.gmra.mxu0 %v136
  %v224 = vpop.f32.mrf.mxu0
  %v225 = vadd.f32 %v109, %v224
  %226 = vmatmul.f32.gmra.mxu0 %v139
  %v227 = vpop.f32.mrf.mxu0
  %v228 = vadd.f32 %v114, %v227
  %229 = vdwg.mxu0
  %v230 = vmax.f32 %v207, 0.0
  %v231 = vmax.f32 %v210, 0.0
  %v232 = vmax.f32 %v213, 0.0
  %v233 = vmax.f32 %v216, 0.0
  %v234 = vmax.f32 %v219, 0.0
  %v235 = vmax.f32 %v222, 0.0
  %v236 = vmax.f32 %v225, 0.0
  %v237 = vmax.f32 %v228, 0.0
  %v238 = vld [vmem:[%s3] sm:$0xff]
  %v239 = vld [vmem:[%s3 + $0x8] sm:$0xff]
  %v240 = vld [vmem:[%s3 + $0x10] sm:$0xff]
  %v241 = vld [vmem:[%s3 + $0x18] sm:$0xff]
  %v242 = vld [vmem:[%s3 + $0x20] sm:$0xff]
  %v243 = vld [vmem:[%s3 + $0x28] sm:$0xff]
  %v244 = vld [vmem:[%s3 + $0x30] sm:$0xff]
  %v245 = vld [vmem:[%s3 + $0x38] sm:$0xff]
  %v246 = vld [vmem:[%s4] sm:$0xff]
  %v247 = vld [vmem:[%s4 + $0x8] sm:$0xff]
  %v248 = vld [vmem:[%s4 + $0x10] sm:$0xff]
  %v249 = vld [vmem:[%s4 + $0x18] sm:$0xff]
  %v250 = vld [vmem:[%s4 + $0x20] sm:$0xff]
  %v251 = vld [vmem:[%s4 + $0x28] sm:$0xff]
  %v252 = vld [vmem:[%s4 + $0x30] sm:$0xff]
  %v253 = vld [vmem:[%s4 + $0x38] sm:$0xff]
  %255 = vset.pattern.permute.xlu0 0
  %256 = vperm.xlu0 %255, %v246
  %v257 = vpop.permute.xlu0 %256
  %260 = vset.pattern.permute.xlu0 0
  %261 = vperm.xlu0 %260, %v247
  %v262 = vpop.permute.xlu0 %261
  %265 = vset.pattern.permute.xlu0 0
  %266 = vperm.xlu0 %265, %v248
  %v267 = vpop.permute.xlu0 %266
  %270 = vset.pattern.permute.xlu0 0
  %271 = vperm.xlu0 %270, %v249
  %v272 = vpop.permute.xlu0 %271
  %275 = vset.pattern.permute.xlu0 0
  %276 = vperm.xlu0 %275, %v250
  %v277 = vpop.permute.xlu0 %276
  %280 = vset.pattern.permute.xlu0 0
  %281 = vperm.xlu0 %280, %v251
  %v282 = vpop.permute.xlu0 %281
  %285 = vset.pattern.permute.xlu0 0
  %286 = vperm.xlu0 %285, %v252
  %v287 = vpop.permute.xlu0 %286
  %290 = vset.pattern.permute.xlu0 0
  %291 = vperm.xlu0 %290, %v253
  %v292 = vpop.permute.xlu0 %291
  %vm294 = vcmask 523264
  %v296 = vsel %vm294, %v238, 0
  %v299 = vsel %vm294, %v239, 0
  %v302 = vsel %vm294, %v240, 0
  %v305 = vsel %vm294, %v241, 0
  %v308 = vsel %vm294, %v242, 0
  %v311 = vsel %vm294, %v243, 0
  %v314 = vsel %vm294, %v244, 0
  %v317 = vsel %vm294, %v245, 0
  %319 = vmatpush.msra.mxu0 0.0
  %320 = vmatpush.msra.mxu0 0.0
  %321 = vmatpush.msra.mxu0 0.0
  %322 = vmatpush.msra.mxu0 0.0
  %323 = vmatpush.msra.mxu0 0.0
  %324 = vmatpush.msra.mxu0 0.0
  %325 = vmatpush.msra.mxu0 0.0
  %326 = vmatpush.msra.mxu0 0.0
  %327 = vmatpush.msra.mxu0 %v237
  %328 = vmatpush.msra.mxu0 %v236
  %329 = vmatpush.msra.mxu0 %v235
  %330 = vmatpush.msra.mxu0 %v234
  %331 = vmatpush.msra.mxu0 %v233
  %332 = vmatpush.msra.mxu0 %v232
  %333 = vmatpush.msra.mxu0 %v231
  %334 = vmatpush.msra.mxu0 %v230
  %335 = vmatmul.f32.gmra.mxu0 %v296
  %v336 = vpop.f32.mrf.mxu0
  %v337 = vadd.f32 %v257, %v336
  %338 = vmatmul.f32.gmra.mxu0 %v299
  %v339 = vpop.f32.mrf.mxu0
  %v340 = vadd.f32 %v262, %v339
  %341 = vmatmul.f32.gmra.mxu0 %v302
  %v342 = vpop.f32.mrf.mxu0
  %v343 = vadd.f32 %v267, %v342
  %344 = vmatmul.f32.gmra.mxu0 %v305
  %v345 = vpop.f32.mrf.mxu0
  %v346 = vadd.f32 %v272, %v345
  %347 = vmatmul.f32.gmra.mxu0 %v308
  %v348 = vpop.f32.mrf.mxu0
  %v349 = vadd.f32 %v277, %v348
  %350 = vmatmul.f32.gmra.mxu0 %v311
  %v351 = vpop.f32.mrf.mxu0
  %v352 = vadd.f32 %v282, %v351
  %353 = vmatmul.f32.gmra.mxu0 %v314
  %v354 = vpop.f32.mrf.mxu0
  %v355 = vadd.f32 %v287, %v354
  %356 = vmatmul.f32.gmra.mxu0 %v317
  %v357 = vpop.f32.mrf.mxu0
  %v358 = vadd.f32 %v292, %v357
  %359 = vdwg.mxu0
  %v360 = vmax.f32 %v337, 0.0
  %v361 = vmax.f32 %v340, 0.0
  %v362 = vmax.f32 %v343, 0.0
  %v363 = vmax.f32 %v346, 0.0
  %v364 = vmax.f32 %v349, 0.0
  %v365 = vmax.f32 %v352, 0.0
  %v366 = vmax.f32 %v355, 0.0
  %v367 = vmax.f32 %v358, 0.0
  %v368 = vld [vmem:[%s5] sm:$0xff]
  %v369 = vld [vmem:[%s5 + $0x8] sm:$0xff]
  %v370 = vld [vmem:[%s5 + $0x10] sm:$0xff]
  %v371 = vld [vmem:[%s5 + $0x18] sm:$0xff]
  %v372 = vld [vmem:[%s6] sm:$0xff]
  %v373 = vld [vmem:[%s6 + $0x8] sm:$0xff]
  %v374 = vld [vmem:[%s6 + $0x10] sm:$0xff]
  %v375 = vld [vmem:[%s6 + $0x18] sm:$0xff]
  %377 = vset.pattern.permute.xlu0 0
  %378 = vperm.xlu0 %377, %v372
  %v379 = vpop.permute.xlu0 %378
  %382 = vset.pattern.permute.xlu0 0
  %383 = vperm.xlu0 %382, %v373
  %v384 = vpop.permute.xlu0 %383
  %387 = vset.pattern.permute.xlu0 0
  %388 = vperm.xlu0 %387, %v374
  %v389 = vpop.permute.xlu0 %388
  %392 = vset.pattern.permute.xlu0 0
  %393 = vperm.xlu0 %392, %v375
  %v394 = vpop.permute.xlu0 %393
  %v397 = vsel %vm294, %v368, 0
  %v400 = vsel %vm294, %v369, 0
  %v403 = vsel %vm294, %v370, 0
  %v406 = vsel %vm294, %v371, 0
  %408 = vmatpush.msra.mxu0 0.0
  %409 = vmatpush.msra.mxu0 0.0
  %410 = vmatpush.msra.mxu0 0.0
  %411 = vmatpush.msra.mxu0 0.0
  %412 = vmatpush.msra.mxu0 0.0
  %413 = vmatpush.msra.mxu0 0.0
  %414 = vmatpush.msra.mxu0 0.0
  %415 = vmatpush.msra.mxu0 0.0
  %416 = vmatpush.msra.mxu0 %v367
  %417 = vmatpush.msra.mxu0 %v366
  %418 = vmatpush.msra.mxu0 %v365
  %419 = vmatpush.msra.mxu0 %v364
  %420 = vmatpush.msra.mxu0 %v363
  %421 = vmatpush.msra.mxu0 %v362
  %422 = vmatpush.msra.mxu0 %v361
  %423 = vmatpush.msra.mxu0 %v360
  %424 = vmatmul.f32.gmra.mxu0 %v397
  %v425 = vpop.f32.mrf.mxu0
  %v426 = vadd.f32 %v379, %v425
  %427 = vmatmul.f32.gmra.mxu0 %v400
  %v428 = vpop.f32.mrf.mxu0
  %v429 = vadd.f32 %v384, %v428
  %430 = vmatmul.f32.gmra.mxu0 %v403
  %v431 = vpop.f32.mrf.mxu0
  %v432 = vadd.f32 %v389, %v431
  %433 = vmatmul.f32.gmra.mxu0 %v406
  %v434 = vpop.f32.mrf.mxu0
  %v435 = vadd.f32 %v394, %v434
  %436 = vdwg.mxu0
  %v437 = vmax.f32 %v426, 0.0
  %v438 = vmax.f32 %v429, 0.0
  %v439 = vmax.f32 %v432, 0.0
  %v440 = vmax.f32 %v435, 0.0
  %v441 = vld [vmem:[%s7] sm:$0xff]
  %v442 = vld [vmem:[%s7 + $0x8] sm:$0xff]
  %v443 = vld [vmem:[%s8] sm:$0xff]
  %v444 = vld [vmem:[%s8 + $0x8] sm:$0xff]
  %446 = vset.pattern.permute.xlu0 0
  %447 = vperm.xlu0 %446, %v443
  %v448 = vpop.permute.xlu0 %447
  %451 = vset.pattern.permute.xlu0 0
  %452 = vperm.xlu0 %451, %v444
  %v453 = vpop.permute.xlu0 %452
  %v456 = vsel %vm116, %v441, 0
  %v459 = vsel %vm116, %v442, 0
  %461 = vmatpush.msra.mxu0 0.0
  %462 = vmatpush.msra.mxu0 0.0
  %463 = vmatpush.msra.mxu0 0.0
  %464 = vmatpush.msra.mxu0 0.0
  %465 = vmatpush.msra.mxu0 0.0
  %466 = vmatpush.msra.mxu0 0.0
  %467 = vmatpush.msra.mxu0 0.0
  %468 = vmatpush.msra.mxu0 0.0
  %469 = vmatpush.msra.mxu0 0.0
  %470 = vmatpush.msra.mxu0 0.0
  %471 = vmatpush.msra.mxu0 0.0
  %472 = vmatpush.msra.mxu0 0.0
  %473 = vmatpush.msra.mxu0 %v440
  %474 = vmatpush.msra.mxu0 %v439
  %475 = vmatpush.msra.mxu0 %v438
  %476 = vmatpush.msra.mxu0 %v437
  %477 = vmatmul.f32.gmra.mxu0 %v456
  %v478 = vpop.f32.mrf.mxu0
  %v479 = vadd.f32 %v448, %v478
  %480 = vmatmul.f32.gmra.mxu0 %v459
  %v481 = vpop.f32.mrf.mxu0
  %v482 = vadd.f32 %v453, %v481
  %483 = vdwg.mxu0
  %v484 = vmax.f32 %v479, 0.0
  %v485 = vmax.f32 %v482, 0.0
  %v486 = vld [vmem:[%s9] sm:$0xff]
  %v487 = vld [vmem:[%s10] sm:$0xff]
  %489 = vset.pattern.permute.xlu0 0
  %490 = vperm.xlu0 %489, %v487
  %v491 = vpop.permute.xlu0 %490
  %vm493 = vcmask 130048
  %v495 = vsel %vm493, %v486, 0
  %497 = vmatpush.msra.mxu0 0.0
  %498 = vmatpush.msra.mxu0 0.0
  %499 = vmatpush.msra.mxu0 0.0
  %500 = vmatpush.msra.mxu0 0.0
  %501 = vmatpush.msra.mxu0 0.0
  %502 = vmatpush.msra.mxu0 0.0
  %503 = vmatpush.msra.mxu0 0.0
  %504 = vmatpush.msra.mxu0 0.0
  %505 = vmatpush.msra.mxu0 0.0
  %506 = vmatpush.msra.mxu0 0.0
  %507 = vmatpush.msra.mxu0 0.0
  %508 = vmatpush.msra.mxu0 0.0
  %509 = vmatpush.msra.mxu0 0.0
  %510 = vmatpush.msra.mxu0 0.0
  %511 = vmatpush.msra.mxu0 %v485
  %512 = vmatpush.msra.mxu0 %v484
  %513 = vmatmul.f32.gmra.mxu0 %v495
  %v514 = vpop.f32.mrf.mxu0
  %v515 = vadd.f32 %v491, %v514
  %516 = vdwg.mxu0
  %v517 = vmax.f32 %v515, 0.0
  %v518 = vld [vmem:[%s11] sm:$0xff]
  %v519 = vld [vmem:[%s12] sm:$0xff]
  %521 = vset.pattern.permute.xlu0 0
  %522 = vperm.xlu0 %521, %v519
  %v523 = vpop.permute.xlu0 %522
  %vm525 = vcmask 64512
  %v527 = vsel %vm525, %v518, 0
  %529 = vmatpush.msra.mxu0 0.0
  %530 = vmatpush.msra.mxu0 0.0
  %531 = vmatpush.msra.mxu0 0.0
  %532 = vmatpush.msra.mxu0 0.0
  %533 = vmatpush.msra.mxu0 0.0
  %534 = vmatpush.msra.mxu0 0.0
  %535 = vmatpush.msra.mxu0 0.0
  %536 = vmatpush.msra.mxu0 0.0
  %537 = vmatpush.msra.mxu0 0.0
  %538 = vmatpush.msra.mxu0 0.0
  %539 = vmatpush.msra.mxu0 0.0
  %540 = vmatpush.msra.mxu0 0.0
  %541 = vmatpush.msra.mxu0 0.0
  %542 = vmatpush.msra.mxu0 0.0
  %543 = vmatpush.msra.mxu0 0.0
  %544 = vmatpush.msra.mxu0 %v517
  %545 = vmatmul.f32.gmra.mxu0 %v527
  %v546 = vpop.f32.mrf.mxu0
  %v547 = vadd.f32 %v523, %v546
  %548 = vdwg.mxu0
  %549 = vst [vmem:[%s13] sm:$0xff] %v547
  // Predicated region
  $region54: #{classification_net_forward.1} parent=0 // pred_check
    _
  $region55: #{classification_net_forward.1} parent=0 // pred_check_branch
    %551 = sbr.rel (0) target = $region57
  $region56: #{classification_net_forward.1} parent=0 // pred_region
    _
  $region57: #{classification_net_forward.1} parent=0 // pred_fallthru
    _
  // Predicated region
  $region58: #{classification_net_forward.1} parent=0 // pred_check
    _
  $region59: #{classification_net_forward.1} parent=0 // pred_check_branch
    %553 = sbr.rel (0) target = $region61
  $region60: #{classification_net_forward.1} parent=0 // pred_region
    _
  $region61: #{classification_net_forward.1} parent=0 // pred_fallthru
    _

</llo_original>
